<compile_context>
chip_gen: v6e
topology: v6e:2x2x1
jax: 0.10.0
libtpu: 0.0.40
codegen_flags: <defaults>
</compile_context>

<pallas_src>
import functools

import jax
import jax.numpy as jnp
from jax.experimental import pallas as pl
from jax.experimental.pallas import tpu as pltpu

# True model dims (from MultiHeadTestNet.__init__).
IN_F = 3
HID_F = 2
OUT_F = 4
TOT_OUT = 2 * OUT_F          # head1 and head2 outputs concatenated -> 8
K_PAD = 8                    # padded contraction width (last dim == full array dim -> legal)
MAX_BATCH_TILE = 512         # mem-bound kernels hit ~85% HBM roofline at 512-1024 row tiles


def _fused_mlp_kernel(x_ref, w_ref, b_ref, out_ref):
    """out = x @ W_eff + b_eff  -- the entire activation-free network in one pass."""
    out_ref[...] = (
        jnp.dot(x_ref[...], w_ref[...], preferred_element_type=jnp.float32)
        + b_ref[...]
    )


def prepare_params(params):
    """One-time parameter prep (NOT on the per-call hot path).

    Collapses trunk + both heads into a single effective weight (8, 8) (rows 0..2 valid)
    and a fused bias (1, 8).
    """
    w1 = params["linear_w"].astype(jnp.float32)      # (2, 3)  [out, in] PyTorch layout
    b1 = params["linear_b"].astype(jnp.float32)      # (2,)
    wh = jnp.concatenate(
        [params["head1_w"], params["head2_w"]], axis=0).astype(jnp.float32)   # (8, 2)
    bh = jnp.concatenate(
        [params["head1_b"], params["head2_b"]], axis=0).astype(jnp.float32)   # (8,)

    w_eff = w1.T @ wh.T                              # (3, 8)
    b_eff = b1 @ wh.T + bh                           # (8,)

    w_p = jnp.zeros((K_PAD, TOT_OUT), jnp.float32).at[:IN_F, :].set(w_eff)    # (8, 8)
    b_p = b_eff[None, :]                                                      # (1, 8)
    return w_p, b_p


def _select_batch_tile(B):
    """Power-of-2 bucket ladder {8,...,512}: <2x pad waste, few recompiles,
    and >=2 grid steps for B>=16 so v7x uses both TensorCores."""
    b8 = max(8, -(-B // 8) * 8)                      # round up to sublane multiple
    tile = 1 << (b8 - 1).bit_length()                # next power of two
    tile = min(tile, 2 * MAX_BATCH_TILE)
    if tile >= 16:
        tile //= 2                                   # force at least 2 grid steps
    return max(8, min(tile, MAX_BATCH_TILE))


@functools.partial(jax.jit, static_argnames=("batch_tile",))
def _forward_impl(x, w_p, b_p, batch_tile):
    B = x.shape[0]
    b_pad = -(-B // batch_tile) * batch_tile

    # Single pad pass: batch -> b_pad rows, features 3 -> 8 lanes.  Padded rows/lanes are
    # zeros; they contribute zeros through the matmul and are sliced away below.
    x_p = jnp.pad(x.astype(jnp.float32), ((0, b_pad - B), (0, K_PAD - IN_F)))

    grid = (b_pad // batch_tile,)
    bytes_accessed = 4 * (b_pad * K_PAD          # x read
                          + K_PAD * TOT_OUT      # weight read
                          + TOT_OUT              # bias read
                          + b_pad * TOT_OUT)     # output write

    out_p = pl.pallas_call(
        _fused_mlp_kernel,
        out_shape=jax.ShapeDtypeStruct((b_pad, TOT_OUT), jnp.float32),
        grid_spec=pltpu.PrefetchScalarGridSpec(
            num_scalar_prefetch=0,
            grid=grid,
            in_specs=[
                pl.BlockSpec((batch_tile, K_PAD), lambda i: (i, 0)),   # x tile
                pl.BlockSpec((K_PAD, TOT_OUT), lambda i: (0, 0)),      # fused weight (resident)
                pl.BlockSpec((1, TOT_OUT), lambda i: (0, 0)),          # fused bias (resident)
            ],
            out_specs=pl.BlockSpec((batch_tile, TOT_OUT), lambda i: (i, 0)),
        ),
        compiler_params=pltpu.CompilerParams(
            dimension_semantics=("parallel",)),      # v7x: shard batch over both TCs
        cost_estimate=pl.CostEstimate(
            flops=2 * b_pad * K_PAD * TOT_OUT,
            transcendentals=0,
            bytes_accessed=bytes_accessed),
    )(x_p, w_p, b_p)

    return out_p[:B, :OUT_F], out_p[:B, OUT_F:TOT_OUT]


def multi_head_test_net_forward(x, w_p, b_p):
    """x: (B, 3) float32; (w_p, b_p) from prepare_params.

    Returns (head1_out, head2_out), each (B, 4), matching MultiHeadTestNet.forward.
    """
    B = x.shape[0]
    if B == 0:   # guard: zero-length grid is not representable
        z = jnp.zeros((0, OUT_F), jnp.float32)
        return z, z
    return _forward_impl(x, w_p, b_p, _select_batch_tile(B))


def init_params(key):
    """Deterministic parameter init with the same shapes as the PyTorch module."""
    k1, k2, k3, k4, k5, k6 = jax.random.split(key, 6)
    return {
        # PyTorch convention: weight shape [out_features, in_features]
        "linear_w": jax.random.normal(k1, (HID_F, IN_F), jnp.float32) * 0.5,
        "linear_b": jax.random.normal(k2, (HID_F,), jnp.float32) * 0.1,
        "head1_w": jax.random.normal(k3, (OUT_F, HID_F), jnp.float32) * 0.5,
        "head1_b": jax.random.normal(k4, (OUT_F,), jnp.float32) * 0.1,
        "head2_w": jax.random.normal(k5, (OUT_F, HID_F), jnp.float32) * 0.5,
        "head2_b": jax.random.normal(k6, (OUT_F,), jnp.float32) * 0.1,
    }


def _reference_forward(x, params):
    """Pure-JAX reference replicating the PyTorch forward for validation."""
    feat = x @ params["linear_w"].T + params["linear_b"]
    o1 = feat @ params["head1_w"].T + params["head1_b"]
    o2 = feat @ params["head2_w"].T + params["head2_b"]
    return o1, o2


if __name__ == "__main__":
    key = jax.random.PRNGKey(0)
    k_params, k_x1, k_x2 = jax.random.split(key, 3)

    params = init_params(k_params)
    w_p, b_p = prepare_params(params)
    w_p = jax.block_until_ready(w_p)
    b_p = jax.block_until_ready(b_p)

    # Small batch (forward implies (B, 3) inputs).
    x_small = jax.random.normal(k_x1, (2, IN_F), jnp.float32)
    o1, o2 = multi_head_test_net_forward(x_small, w_p, b_p)
    o1 = jax.block_until_ready(o1)
    o2 = jax.block_until_ready(o2)
    r1, r2 = _reference_forward(x_small, params)
    assert o1.shape == (2, OUT_F) and o2.shape == (2, OUT_F)
    assert jnp.allclose(o1, r1, atol=1e-5), "head1 mismatch (small batch)"
    assert jnp.allclose(o2, r2, atol=1e-5), "head2 mismatch (small batch)"

    # Ragged mid-size batch exercises the bucketed tile + >=2 grid steps path.
    x_mid = jax.random.normal(k_x2, (37, IN_F), jnp.float32)
    m1, m2 = multi_head_test_net_forward(x_mid, w_p, b_p)
    m1 = jax.block_until_ready(m1)
    m2 = jax.block_until_ready(m2)
    q1, q2 = _reference_forward(x_mid, params)
    assert m1.shape == (37, OUT_F) and m2.shape == (37, OUT_F)
    assert jnp.allclose(m1, q1, atol=1e-5), "head1 mismatch (mid batch)"
    assert jnp.allclose(m2, q2, atol=1e-5), "head2 mismatch (mid batch)"

    print("KERNEL_OK")
</pallas_src>

<mosaic_0001>
module attributes {stable_mosaic.version = 11 : i64} {
  func.func @_fused_mlp_kernel(%arg0: i32, %arg1: memref<8x8xf32, #tpu.memory_space<vmem>>, %arg2: memref<8x8xf32, #tpu.memory_space<vmem>>, %arg3: memref<1x8xf32, #tpu.memory_space<vmem>>, %arg4: memref<8x8xf32, #tpu.memory_space<vmem>>) attributes {dimension_semantics = [#tpu.dimension_semantics<parallel>], iteration_bounds = array<i64: 1>, scalar_prefetch = 0 : i64, scratch_operands = 0 : i64, tpu.core_type = #tpu.core_type<tc>, window_params = [{transform_indices = @transform_0, window_bounds = array<i64: 8, 8>}, {pipeline_mode = #tpu.pipeline_mode<synchronous>, transform_indices = @transform_1, window_bounds = array<i64: 8, 8>}, {pipeline_mode = #tpu.pipeline_mode<synchronous>, transform_indices = @transform_2, window_bounds = array<i64: 1, 8>}, {transform_indices = @transform_3, window_bounds = array<i64: 8, 8>}]} {
    %c0 = arith.constant 0 : index
    %c0_0 = arith.constant 0 : index
    %0 = vector.load %arg1[%c0, %c0_0] : memref<8x8xf32, #tpu.memory_space<vmem>>, vector<8x8xf32>
    %c0_1 = arith.constant 0 : index
    %c0_2 = arith.constant 0 : index
    %1 = vector.load %arg2[%c0_1, %c0_2] : memref<8x8xf32, #tpu.memory_space<vmem>>, vector<8x8xf32>
    %cst = arith.constant dense<0.000000e+00> : vector<8x8xf32>
    %2 = tpu.matmul %0, %1, %cst {dimension_numbers = #tpu.dot_dimension_numbers<[1], [0], [0], [1], [0, 0, 1, 1], [], []>} : vector<8x8xf32>, vector<8x8xf32>, vector<8x8xf32> -> vector<8x8xf32>
    %c0_3 = arith.constant 0 : index
    %c0_4 = arith.constant 0 : index
    %3 = vector.load %arg3[%c0_3, %c0_4] : memref<1x8xf32, #tpu.memory_space<vmem>>, vector<1x8xf32>
    %4 = vector.broadcast %3 : vector<1x8xf32> to vector<8x8xf32>
    %5 = arith.addf %2, %4 : vector<8x8xf32>
    %c0_5 = arith.constant 0 : index
    %c0_6 = arith.constant 0 : index
    %6 = vector.load %arg4[%c0_5, %c0_6] : memref<8x8xf32, #tpu.memory_space<vmem>>, vector<8x8xf32>
    tpu.vector_store %arg4[%c0_5, %c0_6], %5 {strides = array<i32>} : memref<8x8xf32, #tpu.memory_space<vmem>>, vector<8x8xf32>,
    return
  }
  func.func @transform_0(%arg0: i32) -> (i32, i32) {
    %c0_i32 = arith.constant 0 : i32
    %c0_i32_0 = arith.constant 0 : i32
    return %arg0, %c0_i32 : i32, i32
  }
  func.func @transform_1(%arg0: i32) -> (i32, i32) {
    %c0_i32 = arith.constant 0 : i32
    %c0_i32_0 = arith.constant 0 : i32
    %c0_i32_1 = arith.constant 0 : i32
    return %c0_i32, %c0_i32_0 : i32, i32
  }
  func.func @transform_2(%arg0: i32) -> (i32, i32) {
    %c0_i32 = arith.constant 0 : i32
    %c0_i32_0 = arith.constant 0 : i32
    %c0_i32_1 = arith.constant 0 : i32
    return %c0_i32, %c0_i32_0 : i32, i32
  }
  func.func @transform_3(%arg0: i32) -> (i32, i32) {
    %c0_i32 = arith.constant 0 : i32
    %c0_i32_0 = arith.constant 0 : i32
    return %arg0, %c0_i32 : i32, i32
  }
}

</mosaic_0001>

<llo_original>
// kernel: _forward_impl.1
$region0: #{_forward_impl.1}
  #allocation0 [shape = 'u32[]', space=smem, size = 0x4, offset = 0x4, fixed_abs, tag = 'smem constant byte address 0x4 - core index']
  #allocation1 [shape = 'u32[144,128]{1,0:T(1,128)}', space=vmem, size = 0x12000, scoped, tag = 'internal scratch']
  %s0 = inlined_call_operand.vmem [shape: f32[8,8], index: 0, kind: input, shape index: {}]
  %s1 = inlined_call_operand.vmem [shape: f32[8,8], index: 1, kind: input, shape index: {}]
  %s2 = inlined_call_operand.vmem [shape: f32[1,8], index: 2, kind: input, shape index: {}]
  %s3 = inlined_call_operand.vmem [shape: f32[8,8], index: 3, kind: output, shape index: {}]
  %s4 = sld [smem:[#allocation0]]
  $region22: #{_forward_impl.1} parent=0
    _
  %s6 = ssub.s32 1, %s4
  %s7 = scalar_select 0, %s6, %s4
  // Predicated region
  $region2: #{_forward_impl.1} parent=0 // pred_check
    _
  $region3: #{_forward_impl.1} parent=0 // pred_check_branch
    %9 = sbr.rel (0) target = $region5
  $region4: #{_forward_impl.1} parent=0 // pred_region
    _
  $region5: #{_forward_impl.1} parent=0 // pred_fallthru
    _
  // Predicated region
  $region6: #{_forward_impl.1} parent=0 // pred_check
    _
  $region7: #{_forward_impl.1} parent=0 // pred_check_branch
    %11 = sbr.rel (0) target = $region9
  $region8: #{_forward_impl.1} parent=0 // pred_region
    _
  $region9: #{_forward_impl.1} parent=0 // pred_fallthru
    _
  // Predicated region
  $region10: #{_forward_impl.1} parent=0 // pred_check
    _
  $region11: #{_forward_impl.1} parent=0 // pred_check_branch
    %13 = sbr.rel (0) target = $region13
  $region12: #{_forward_impl.1} parent=0 // pred_region
    _
  $region13: #{_forward_impl.1} parent=0 // pred_fallthru
    _
  %v14 = vld [vmem:[%s0] sm:$0xff]
  %v15 = vld [vmem:[%s1] sm:$0xff]
  %v16 = vld [vmem:[%s2] sm:$0x1]
  %v18 = vlaneseq
  %v19 = vshrl.u32 %v18, 7
  %v20 = vsub.s32 0, %v19
  %v21 = vrot.slane %v16, %v20
  %vm23 = vcmask 64512
  %v25 = vsel %vm23, %v14, 0
  %27 = vmatprep.subr.mxu0 0.0
  %28 = vmatpush1.msra.mxu0 0.0
  %29 = vmatprep.subr.mxu0 0.0
  %30 = vmatpush1.msra.mxu0 0.0
  %31 = vmatprep.subr.mxu0 0.0
  %32 = vmatpush1.msra.mxu0 0.0
  %33 = vmatprep.subr.mxu0 0.0
  %34 = vmatpush1.msra.mxu0 0.0
  %35 = vmatprep.subr.mxu0 0.0
  %36 = vmatpush1.msra.mxu0 0.0
  %37 = vmatprep.subr.mxu0 0.0
  %38 = vmatpush1.msra.mxu0 0.0
  %39 = vmatprep.subr.mxu0 0.0
  %40 = vmatpush1.msra.mxu0 0.0
  %41 = vmatprep.subr.mxu0 0.0
  %42 = vmatpush1.msra.mxu0 0.0
  %43 = vmatprep.subr.mxu0 0.0
  %44 = vmatpush1.msra.mxu0 0.0
  %45 = vmatprep.subr.mxu0 0.0
  %46 = vmatpush1.msra.mxu0 0.0
  %47 = vmatprep.subr.mxu0 0.0
  %48 = vmatpush1.msra.mxu0 0.0
  %49 = vmatprep.subr.mxu0 0.0
  %50 = vmatpush1.msra.mxu0 0.0
  %51 = vmatprep.subr.mxu0 0.0
  %52 = vmatpush1.msra.mxu0 0.0
  %53 = vmatprep.subr.mxu0 0.0
  %54 = vmatpush1.msra.mxu0 0.0
  %55 = vmatprep.subr.mxu0 0.0
  %56 = vmatpush1.msra.mxu0 0.0
  %57 = vmatprep.subr.mxu0 0.0
  %58 = vmatpush1.msra.mxu0 %v15
  %59 = vmatprep.subr.mxu0 0.0
  %60 = vmatpush2.msra.mxu0 0.0
  %61 = vmatprep.subr.mxu0 0.0
  %62 = vmatpush2.msra.mxu0 0.0
  %63 = vmatprep.subr.mxu0 0.0
  %64 = vmatpush2.msra.mxu0 0.0
  %65 = vmatprep.subr.mxu0 0.0
  %66 = vmatpush2.msra.mxu0 0.0
  %67 = vmatprep.subr.mxu0 0.0
  %68 = vmatpush2.msra.mxu0 0.0
  %69 = vmatprep.subr.mxu0 0.0
  %70 = vmatpush2.msra.mxu0 0.0
  %71 = vmatprep.subr.mxu0 0.0
  %72 = vmatpush2.msra.mxu0 0.0
  %73 = vmatprep.subr.mxu0 0.0
  %74 = vmatpush2.msra.mxu0 0.0
  %75 = vmatprep.subr.mxu0 0.0
  %76 = vmatpush2.msra.mxu0 0.0
  %77 = vmatprep.subr.mxu0 0.0
  %78 = vmatpush2.msra.mxu0 0.0
  %79 = vmatprep.subr.mxu0 0.0
  %80 = vmatpush2.msra.mxu0 0.0
  %81 = vmatprep.subr.mxu0 0.0
  %82 = vmatpush2.msra.mxu0 0.0
  %83 = vmatprep.subr.mxu0 0.0
  %84 = vmatpush2.msra.mxu0 0.0
  %85 = vmatprep.subr.mxu0 0.0
  %86 = vmatpush2.msra.mxu0 0.0
  %87 = vmatprep.subr.mxu0 0.0
  %88 = vmatpush2.msra.mxu0 0.0
  %89 = vmatprep.subr.mxu0 0.0
  %90 = vmatpush2.msra.mxu0 0.0
  %91 = vmatprep.mubr.f32.mxu0 0.0
  %92 = vmatmul.mubr.f32.gmra.mxu0 %v25
  %v93 = vpop.f32.mrf.mxu0
  %v94 = vadd.f32 %v21, %v93
  %v95 = vpop.f32.mrf.mxu0
  %96 = vdwg.mxu0
  %97 = vst.msk [vmem:[%s3] sm:$0xff] %vm23, %v94
  // Predicated region
  $region14: #{_forward_impl.1} parent=0 // pred_check
    _
  $region15: #{_forward_impl.1} parent=0 // pred_check_branch
    %99 = sbr.rel (0) target = $region17
  $region16: #{_forward_impl.1} parent=0 // pred_region
    _
  $region17: #{_forward_impl.1} parent=0 // pred_fallthru
    _
  // Predicated region
  $region18: #{_forward_impl.1} parent=0 // pred_check
    _
  $region19: #{_forward_impl.1} parent=0 // pred_check_branch
    %101 = sbr.rel (0) target = $region21
  $region20: #{_forward_impl.1} parent=0 // pred_region
    _
  $region21: #{_forward_impl.1} parent=0 // pred_fallthru
    _

</llo_original>
